<compile_context>
chip_gen: v7x
topology: tpu7x:2x2x1
jax: 0.10.0
libtpu: 0.0.40
codegen_flags: <defaults>
</compile_context>

<pallas_src>
import functools

import jax
import jax.numpy as jnp
from jax.experimental import pallas as pl
from jax.experimental.pallas import tpu as pltpu


MAX_MATCHED_BOXES = 128   # static lane-padded capacity for matched boxes


# ----------------------------------------------------------------------------
# Fused per-decoder-layer loss kernel (focal + cardinality + L1 + GIoU)
# ----------------------------------------------------------------------------
def _detr_layer_kernel(meta_ref, logits_ref, tclass_ref, sbox_ref, tbox_ref,
                       out_ref, *, alpha, num_images):
    # meta_ref   : SMEM int32 [1 + B] = [num_valid_matched_boxes, len(t_0), ...]
    # logits_ref : [1, B, Q, C]  native model layout (classes on the lane axis)
    # tclass_ref : [1, B, Q] int32 matched class map (num_classes == "no object")
    # sbox_ref   : [1, 4, Mp]  matched predicted boxes (cx, cy, w, h), coord-major
    # tbox_ref   : [1, 4, Mp]  matched target boxes (padded slots = unit box)
    # out_ref    : [1, 8, 128] row 0 lanes 0..3 = (focal_sum, card_err, l1, giou)
    x = logits_ref[0].astype(jnp.float32)             # (B, Q, C)
    tc = tclass_ref[0]                                # (B, Q) int32
    B, Q, C = x.shape

    # --- sigmoid focal loss, vectorised over the whole block -----------------
    cls = jax.lax.broadcasted_iota(jnp.int32, (B, Q, C), 2)
    t = (cls == tc[:, :, None]).astype(jnp.float32)   # one-hot; no-object -> 0s
    e = jnp.exp(-jnp.abs(x))                          # shared by BCE and sigmoid
    ce = jnp.maximum(x, 0.0) - x * t + jnp.log1p(e)   # stable BCE-with-logits
    inv = pl.reciprocal(1.0 + e, approx=True)
    prob = jnp.where(x >= 0.0, 1.0, e) * inv          # == sigmoid(x)
    p_t = prob * t + (1.0 - prob) * (1.0 - t)
    om = 1.0 - p_t
    lb = ce * om * om                                 # gamma == 2 (per forward)
    if alpha >= 0:
        lb = (alpha * t + (1.0 - alpha) * (1.0 - t)) * lb
    focal_sum = jnp.sum(lb)

    # --- cardinality: argmax(-1) != C-1  <=>  max over classes 0..C-2 >= last
    if C > 1:
        max_rest = jnp.max(x[..., :C - 1], axis=-1, keepdims=True)     # (B,Q,1)
        non_empty = (max_rest >= x[..., C - 1:]).astype(jnp.float32)   # (B,Q,1)
    else:
        non_empty = jnp.zeros((B, Q, 1), jnp.float32)
    card_err = jnp.float32(0.0)
    for b in range(B):   # tiny per-image reduce + SMEM scalar target length
        card_err = card_err + jnp.abs(
            jnp.sum(non_empty[b]) - meta_ref[1 + b].astype(jnp.float32))
    card_err = card_err / num_images

    # --- box losses: L1 + GIoU over matched boxes (runtime-masked padding) ----
    s = sbox_ref[0].astype(jnp.float32)               # (4, Mp)
    tb = tbox_ref[0].astype(jnp.float32)
    Mp = s.shape[1]
    lane_idx = jax.lax.broadcasted_iota(jnp.int32, (1, Mp), 1)
    valid = (lane_idx < meta_ref[0]).astype(jnp.float32)
    l1_sum = jnp.sum(jnp.abs(s - tb) * valid)

    def xyxy(bx):
        cx, cy, w, h = bx[0:1, :], bx[1:2, :], bx[2:3, :], bx[3:4, :]
        return cx - 0.5 * w, cy - 0.5 * h, cx + 0.5 * w, cy + 0.5 * h

    sx1, sy1, sx2, sy2 = xyxy(s)
    tx1, ty1, tx2, ty2 = xyxy(tb)
    eps = jnp.float32(1e-7)   # TODO(synk): reference divides exactly (asserts well-formed boxes)
    area_s = (sx2 - sx1) * (sy2 - sy1)
    area_t = (tx2 - tx1) * (ty2 - ty1)
    iw = jnp.maximum(jnp.minimum(sx2, tx2) - jnp.maximum(sx1, tx1), 0.0)
    ih = jnp.maximum(jnp.minimum(sy2, ty2) - jnp.maximum(sy1, ty1), 0.0)
    inter = iw * ih
    union = area_s + area_t - inter
    iou = inter / (union + eps)
    cw = jnp.maximum(sx2, tx2) - jnp.minimum(sx1, tx1)
    ch = jnp.maximum(sy2, ty2) - jnp.minimum(sy1, ty1)
    area_c = cw * ch
    giou = iou - (area_c - union) / (area_c + eps)
    giou_sum = jnp.sum((1.0 - giou) * valid)

    # --- pack the 4 scalars into one lane-dense (8,128) tile -----------------
    sub = jax.lax.broadcasted_iota(jnp.int32, (8, 128), 0)
    ln = jax.lax.broadcasted_iota(jnp.int32, (8, 128), 1)
    row0 = sub == 0
    res = jnp.where(row0 & (ln == 0), focal_sum, 0.0)
    res = res + jnp.where(row0 & (ln == 1), card_err, 0.0)
    res = res + jnp.where(row0 & (ln == 2), l1_sum, 0.0)
    res = res + jnp.where(row0 & (ln == 3), giou_sum, 0.0)
    out_ref[0] = res


def fused_detr_layer_losses(meta, logits, tclass, sbox, tbox, *, alpha,
                            num_images):
    """One gridded pallas_call over all decoder layers.

    meta  [1+B] int32 runtime scalars (valid matched boxes, per-image counts),
    logits [L,B,Q,C], tclass [L,B,Q] i32, sbox/tbox [L,4,Mp] f32 (Mp static).
    Returns [L,8,128] f32; row 0 lanes 0..3 per layer hold
    (focal_sum, cardinality_error, l1_sum, giou_sum).
    """
    L, B, Q, C = logits.shape
    Mp = sbox.shape[-1]
    kernel = functools.partial(_detr_layer_kernel, alpha=alpha,
                               num_images=num_images)
    return pl.pallas_call(
        kernel,
        out_shape=jax.ShapeDtypeStruct((L, 8, 128), jnp.float32),
        grid_spec=pltpu.PrefetchScalarGridSpec(
            num_scalar_prefetch=1,
            grid=(L,),
            in_specs=[
                pl.BlockSpec((1, B, Q, C), lambda l, m: (l, 0, 0, 0)),
                pl.BlockSpec((1, B, Q), lambda l, m: (l, 0, 0)),
                pl.BlockSpec((1, 4, Mp), lambda l, m: (l, 0, 0)),
                pl.BlockSpec((1, 4, Mp), lambda l, m: (l, 0, 0)),
            ],
            out_specs=pl.BlockSpec((1, 8, 128), lambda l, m: (l, 0, 0)),
        ),
        compiler_params=pltpu.CompilerParams(
            dimension_semantics=("parallel",)),   # layers independent -> megacore
    )(meta, logits, tclass, sbox, tbox)


# ----------------------------------------------------------------------------
# Domain-adaptation BCE loss: big-tile 2-axis reduction (parallel x arbitrary)
# ----------------------------------------------------------------------------
def _da_bce_kernel(meta_ref, x_ref, out_ref, *, lane, block_rows,
                   chunks_per_half):
    # meta_ref : SMEM int32 [2] = [n_total_elements, n_first_half_elements]
    # x_ref    : [block_rows, lane] slab of the flattened (padded) DA features
    # out_ref  : [1, 8, lane] resident per-lane partial-sum accumulator
    h = pl.program_id(0)
    i = pl.program_id(1)

    @pl.when(i == 0)
    def _():
        out_ref[...] = jnp.zeros_like(out_ref)

    x = x_ref[...].astype(jnp.float32)
    n_total = meta_ref[0]
    n_half = meta_ref[1]
    row0 = (h * chunks_per_half + i) * block_rows
    r = jax.lax.broadcasted_iota(jnp.int32, (block_rows, lane), 0)
    c = jax.lax.broadcasted_iota(jnp.int32, (block_rows, lane), 1)
    flat = (row0 + r) * lane + c
    t = (flat >= n_half).astype(jnp.float32)   # first half -> 0, second -> 1
    loss = jnp.maximum(x, 0.0) - x * t + jnp.log1p(jnp.exp(-jnp.abs(x)))
    loss = jnp.where(flat < n_total, loss, 0.0)          # mask padded tail
    # (8, lane) per-lane partial accumulation; final cross-lane reduce in JAX.
    out_ref[0] = out_ref[0] + jnp.sum(
        loss.reshape(block_rows // 8, 8, lane), axis=0)


def da_bce_loss_mean(x, *, lane=512, max_block_rows=1024):
    """mean(BCE-with-logits(x, [0 for first half of batch, 1 for second]))."""
    b = x.shape[0]
    assert b % 2 == 0, "DA loss expects an even batch (source/target halves)"
    flat = x.reshape(-1)
    n = int(flat.shape[0])
    half = n // 2                       # row-major: first B/2 samples exactly
    rows_needed = max(1, -(-n // lane))
    # ~2 MiB max block; rows multiple of 8; total rows multiple of 2*block_rows
    block_rows = min(max_block_rows, ((-(-rows_needed // 2) + 7) // 8) * 8)
    chunks_per_half = -(-rows_needed // (2 * block_rows))
    total_rows = 2 * chunks_per_half * block_rows
    pad = total_rows * lane - n
    x2 = jnp.pad(flat, (0, pad)).reshape(total_rows, lane)
    meta = jnp.asarray([n, half], dtype=jnp.int32)

    kernel = functools.partial(_da_bce_kernel, lane=lane, block_rows=block_rows,
                               chunks_per_half=chunks_per_half)
    out = pl.pallas_call(
        kernel,
        out_shape=jax.ShapeDtypeStruct((2, 8, lane), jnp.float32),
        grid_spec=pltpu.PrefetchScalarGridSpec(
            num_scalar_prefetch=1,
            grid=(2, chunks_per_half),
            in_specs=[pl.BlockSpec(
                (block_rows, lane),
                lambda h, i, m: (h * chunks_per_half + i, 0))],
            out_specs=pl.BlockSpec((1, 8, lane), lambda h, i, m: (h, 0, 0)),
        ),
        compiler_params=pltpu.CompilerParams(
            dimension_semantics=("parallel", "arbitrary"),  # 2 TCs on v7x
            vmem_limit_bytes=32 * 1024 * 1024),
    )(meta, x2)
    return jnp.sum(out) / n


# ----------------------------------------------------------------------------
# Matcher stub
# ----------------------------------------------------------------------------
def simple_matcher(outputs, targets):
    # TODO(synk): Hungarian assignment (scipy.optimize.linear_sum_assignment) has
    # no clean Pallas equivalent; deterministic identity matching (target j -> query j).
    return [(jnp.arange(len(t['labels']), dtype=jnp.int32),
             jnp.arange(len(t['labels']), dtype=jnp.int32)) for t in targets]


# ----------------------------------------------------------------------------
# SetCriterion (JAX/Pallas version of the PyTorch module)
# ----------------------------------------------------------------------------
class SetCriterion:
    def __init__(self, num_classes, matcher, weight_dict, losses,
                 focal_alpha=0.25, da_gamma=2):
        self.num_classes = num_classes
        self.matcher = matcher
        self.weight_dict = weight_dict
        self.losses = losses
        self.focal_alpha = focal_alpha
        self.da_gamma = da_gamma

    def _get_src_permutation_idx(self, indices):
        batch_idx = jnp.concatenate(
            [jnp.full_like(src, i) for i, (src, _) in enumerate(indices)])
        src_idx = jnp.concatenate([src for src, _ in indices])
        return batch_idx, src_idx

    def loss_da(self, out, use_focal=False):
        # use_focal=False in forward(); the focal re-weighting branch is unused.
        return da_bce_loss_mean(out)

    def __call__(self, outputs, targets, ssod_flag=False):
        for loss in self.losses:
            assert loss in ('labels', 'cardinality', 'boxes'), \
                f'do you really want to compute {loss} loss?'
        # TODO(synk): loss_masks (nested_tensor_from_tensor_list + bilinear
        # interpolate) is not implemented; 'masks' is unsupported here.

        if ssod_flag:
            outputs = dict(outputs)
            outputs['pred_boxes'] = outputs.pop('pred_boxes_unlabel')
            outputs['pred_logits'] = outputs.pop('pred_logits_unlabel')
            key_aux, key_enc = 'aux_outputs_unlabel', 'enc_outputs_unlabel'
            outputs_without_aux = {k.replace('_unlabel', ''): v
                                   for k, v in outputs.items()
                                   if k not in (key_aux, key_enc)}
        else:
            key_aux, key_enc = 'aux_outputs', 'enc_outputs'
            outputs_without_aux = {k: v for k, v in outputs.items()
                                   if k not in (key_aux, key_enc)}
        if len(targets) == 0:
            return {}

        tgt_lengths = [int(len(t['labels'])) for t in targets]
        M = int(sum(tgt_lengths))
        # TODO(synk): reference all-reduces num_boxes across data-parallel workers.
        num_boxes = max(float(M), 1.0)
        B, Q, _C = outputs_without_aux['pred_logits'].shape
        gather_boxes = ('boxes' in self.losses) and M > 0
        # static pad width -> the Pallas kernel never recompiles per batch
        Mp = max(MAX_MATCHED_BOXES, ((M + 127) // 128) * 128)

        # ---- one "job" per decoder layer (main + aux + enc) -------------------
        jobs = [("", outputs_without_aux, targets, True)]
        if key_aux in outputs:
            for i, aux in enumerate(outputs[key_aux]):
                jobs.append((f"_{i}", aux, targets, False))
        if key_enc in outputs:
            bin_targets = [dict(t, labels=jnp.zeros_like(t['labels']))
                           for t in targets]
            jobs.append(("_enc", outputs[key_enc], bin_targets, False))

        logits_l, tclass_l, sbox_l, tbox_l, per_layer = [], [], [], [], []
        for suffix, lo, lt, log in jobs:
            indices = self.matcher(lo, lt)
            batch_idx, src_idx = self._get_src_permutation_idx(indices)
            target_classes_o = jnp.concatenate(
                [t['labels'][J] for t, (_, J) in zip(lt, indices)]).astype(jnp.int32)
            target_classes = jnp.full((B, Q), self.num_classes, dtype=jnp.int32)
            if M > 0:
                target_classes = target_classes.at[batch_idx, src_idx].set(
                    target_classes_o)
            logits_l.append(lo['pred_logits'])      # native [B,Q,C]; no transpose/cast
            tclass_l.append(target_classes)

            if gather_boxes:
                sb = lo['pred_boxes'][batch_idx, src_idx].astype(jnp.float32)
                tb = jnp.concatenate([t['boxes'][i] for t, (_, i) in zip(lt, indices)],
                                     axis=0).astype(jnp.float32)
            else:
                sb = jnp.zeros((0, 4), jnp.float32)
                tb = jnp.zeros((0, 4), jnp.float32)
            npad = Mp - sb.shape[0]
            pad_rows = jnp.tile(jnp.asarray([[0.5, 0.5, 1.0, 1.0]], jnp.float32),
                                (npad, 1))
            sbox_l.append(jnp.concatenate([sb, pad_rows], axis=0).T)   # [4, Mp]
            tbox_l.append(jnp.concatenate([tb, pad_rows], axis=0).T)
            per_layer.append((suffix, log, lo, batch_idx, src_idx, target_classes_o))

        meta = jnp.asarray([M if gather_boxes else 0] + tgt_lengths,
                           dtype=jnp.int32)
        stats = fused_detr_layer_losses(
            meta, jnp.stack(logits_l), jnp.stack(tclass_l),
            jnp.stack(sbox_l), jnp.stack(tbox_l),
            alpha=self.focal_alpha, num_images=B)

        losses = {}
        for l, (suffix, log, lo, batch_idx, src_idx, tco) in enumerate(per_layer):
            if 'labels' in self.losses:
                # sigmoid_focal_loss(...).mean(1).sum()/num_boxes * Q == focal_sum/num_boxes
                losses['loss_ce' + suffix] = stats[l, 0, 0] / num_boxes
                if log and M > 0:
                    matched_logits = lo['pred_logits'][batch_idx, src_idx]
                    pred = jnp.argmax(matched_logits, axis=-1)
                    acc = 100.0 * jnp.mean((pred == tco).astype(jnp.float32))
                    losses['class_error' + suffix] = 100.0 - acc
            if 'cardinality' in self.losses:
                losses['cardinality_error' + suffix] = stats[l, 0, 1]
            if 'boxes' in self.losses:
                losses['loss_bbox' + suffix] = stats[l, 0, 2] / num_boxes
                losses['loss_giou' + suffix] = stats[l, 0, 3] / num_boxes

        if 'da_output' in outputs:
            for k, v in outputs['da_output'].items():
                losses[f'loss_{k}'] = self.loss_da(v, use_focal=False)
        return losses


# ----------------------------------------------------------------------------
# Example run
# ----------------------------------------------------------------------------
if __name__ == "__main__":
    key = jax.random.PRNGKey(0)
    B, Q, C, D = 2, 16, 4, 32
    k1, k2, k3, k4, k5, k6, k7, k8 = jax.random.split(key, 8)

    pred_logits = jax.random.normal(k1, (B, Q, C), dtype=jnp.float32)
    pred_boxes = jax.nn.sigmoid(jax.random.normal(k2, (B, Q, 4), dtype=jnp.float32))
    aux_logits = jax.random.normal(k3, (B, Q, C), dtype=jnp.float32)
    aux_boxes = jax.nn.sigmoid(jax.random.normal(k4, (B, Q, 4), dtype=jnp.float32))
    enc_logits = jax.random.normal(k7, (B, Q, C), dtype=jnp.float32)
    enc_boxes = jax.nn.sigmoid(jax.random.normal(k8, (B, Q, 4), dtype=jnp.float32))
    da_out = jax.random.normal(k5, (B, D), dtype=jnp.float32)

    targets = []
    n_per_image = (3, 3)
    tkeys = jax.random.split(k6, 3 * len(n_per_image))
    for i, n in enumerate(n_per_image):
        labels = jax.random.randint(tkeys[3 * i], (n,), 0, C).astype(jnp.int32)
        cxcy = 0.2 + 0.6 * jax.random.uniform(tkeys[3 * i + 1], (n, 2))
        wh = 0.05 + 0.25 * jax.random.uniform(tkeys[3 * i + 2], (n, 2))
        boxes = jnp.concatenate([cxcy, wh], axis=1).astype(jnp.float32)
        targets.append({'labels': labels, 'boxes': boxes})

    outputs = {
        'pred_logits': pred_logits,
        'pred_boxes': pred_boxes,
        'aux_outputs': [{'pred_logits': aux_logits, 'pred_boxes': aux_boxes}],
        'enc_outputs': {'pred_logits': enc_logits, 'pred_boxes': enc_boxes},
        'da_output': {'backbone': da_out},
    }

    criterion = SetCriterion(
        num_classes=C,
        matcher=simple_matcher,
        weight_dict={'loss_ce': 2.0, 'loss_bbox': 5.0, 'loss_giou': 2.0},
        losses=['labels', 'boxes', 'cardinality'],
        focal_alpha=0.25,
        da_gamma=2,
    )

    losses = criterion(outputs, targets)
    losses = {k: jax.block_until_ready(v) for k, v in losses.items()}
    assert all(bool(jnp.isfinite(v)) for v in losses.values())
    print("KERNEL_OK")
</pallas_src>

<mosaic_0001>
module attributes {stable_mosaic.version = 11 : i64} {
  func.func @_detr_layer_kernel(%arg0: i32, %arg1: memref<3xi32, #tpu.memory_space<smem>>, %arg2: memref<1x2x16x4xf32, #tpu.memory_space<vmem>>, %arg3: memref<1x2x16xi32, #tpu.memory_space<vmem>>, %arg4: memref<1x4x128xf32, #tpu.memory_space<vmem>>, %arg5: memref<1x4x128xf32, #tpu.memory_space<vmem>>, %arg6: memref<1x8x128xf32, #tpu.memory_space<vmem>>) attributes {dimension_semantics = [#tpu.dimension_semantics<parallel>], iteration_bounds = array<i64: 3>, scalar_prefetch = 1 : i64, scratch_operands = 0 : i64, tpu.core_type = #tpu.core_type<tc>, window_params = [{transform_indices = @transform_0, window_bounds = array<i64: 1, 2, 16, 4>}, {transform_indices = @transform_1, window_bounds = array<i64: 1, 2, 16>}, {transform_indices = @transform_2, window_bounds = array<i64: 1, 4, 128>}, {transform_indices = @transform_3, window_bounds = array<i64: 1, 4, 128>}, {transform_indices = @transform_4, window_bounds = array<i64: 1, 8, 128>}]} {
    %c0 = arith.constant 0 : index
    %c0_0 = arith.constant 0 : index
    %c0_1 = arith.constant 0 : index
    %c0_2 = arith.constant 0 : index
    %0 = vector.load %arg2[%c0, %c0_0, %c0_1, %c0_2] : memref<1x2x16x4xf32, #tpu.memory_space<vmem>>, vector<1x2x16x4xf32>
    %1 = vector.shape_cast %0 : vector<1x2x16x4xf32> to vector<2x16x4xf32>
    %c0_3 = arith.constant 0 : index
    %c0_4 = arith.constant 0 : index
    %c0_5 = arith.constant 0 : index
    %2 = vector.load %arg3[%c0_3, %c0_4, %c0_5] : memref<1x2x16xi32, #tpu.memory_space<vmem>>, vector<1x2x16xi32>
    %3 = vector.shape_cast %2 : vector<1x2x16xi32> to vector<2x16xi32>
    %4 = tpu.iota {dimensions = array<i32: 2>} : vector<2x16x4xi32>
    %5 = vector.shape_cast %3 : vector<2x16xi32> to vector<2x16x1xi32>
    %6 = vector.broadcast %5 : vector<2x16x1xi32> to vector<2x16x4xi32>
    %7 = arith.cmpi eq, %4, %6 : vector<2x16x4xi32>
    %8 = arith.extui %7 : vector<2x16x4xi1> to vector<2x16x4xi32>
    %9 = arith.sitofp %8 : vector<2x16x4xi32> to vector<2x16x4xf32>
    %10 = math.absf %1 : vector<2x16x4xf32>
    %cst = arith.constant 0.000000e+00 : f32
    %11 = vector.broadcast %cst : f32 to vector<2x16x4xf32>
    %12 = arith.subf %11, %10 : vector<2x16x4xf32>
    %13 = math.exp %12 : vector<2x16x4xf32>
    %cst_6 = arith.constant 0.000000e+00 : f32
    %14 = vector.broadcast %cst_6 : f32 to vector<2x16x4xf32>
    %15 = arith.maximumf %1, %14 : vector<2x16x4xf32>
    %16 = arith.mulf %1, %9 : vector<2x16x4xf32>
    %17 = arith.subf %15, %16 : vector<2x16x4xf32>
    %18 = math.log1p %13 : vector<2x16x4xf32>
    %19 = arith.addf %17, %18 : vector<2x16x4xf32>
    %cst_7 = arith.constant 1.000000e+00 : f32
    %20 = vector.broadcast %cst_7 : f32 to vector<2x16x4xf32>
    %21 = arith.addf %20, %13 : vector<2x16x4xf32>
    %22 = tpu.reciprocal %21 {approx = true} : vector<2x16x4xf32> -> vector<2x16x4xf32>
    %cst_8 = arith.constant 0.000000e+00 : f32
    %23 = vector.broadcast %cst_8 : f32 to vector<2x16x4xf32>
    %24 = arith.cmpf oge, %1, %23 : vector<2x16x4xf32>
    %cst_9 = arith.constant 1.000000e+00 : f32
    %25 = vector.broadcast %cst_9 : f32 to vector<2x16x4xf32>
    %26 = arith.select %24, %25, %13 : vector<2x16x4xi1>, vector<2x16x4xf32>
    %27 = arith.mulf %26, %22 : vector<2x16x4xf32>
    %28 = arith.mulf %27, %9 : vector<2x16x4xf32>
    %cst_10 = arith.constant 1.000000e+00 : f32
    %29 = vector.broadcast %cst_10 : f32 to vector<2x16x4xf32>
    %30 = arith.subf %29, %27 : vector<2x16x4xf32>
    %cst_11 = arith.constant 1.000000e+00 : f32
    %31 = vector.broadcast %cst_11 : f32 to vector<2x16x4xf32>
    %32 = arith.subf %31, %9 : vector<2x16x4xf32>
    %33 = arith.mulf %30, %32 : vector<2x16x4xf32>
    %34 = arith.addf %28, %33 : vector<2x16x4xf32>
    %cst_12 = arith.constant 1.000000e+00 : f32
    %35 = vector.broadcast %cst_12 : f32 to vector<2x16x4xf32>
    %36 = arith.subf %35, %34 : vector<2x16x4xf32>
    %37 = arith.mulf %19, %36 : vector<2x16x4xf32>
    %38 = arith.mulf %37, %36 : vector<2x16x4xf32>
    %cst_13 = arith.constant 2.500000e-01 : f32
    %39 = vector.broadcast %cst_13 : f32 to vector<2x16x4xf32>
    %40 = arith.mulf %39, %9 : vector<2x16x4xf32>
    %cst_14 = arith.constant 1.000000e+00 : f32
    %41 = vector.broadcast %cst_14 : f32 to vector<2x16x4xf32>
    %42 = arith.subf %41, %9 : vector<2x16x4xf32>
    %cst_15 = arith.constant 7.500000e-01 : f32
    %43 = vector.broadcast %cst_15 : f32 to vector<2x16x4xf32>
    %44 = arith.mulf %43, %42 : vector<2x16x4xf32>
    %45 = arith.addf %40, %44 : vector<2x16x4xf32>
    %46 = arith.mulf %45, %38 : vector<2x16x4xf32>
    %47 = vector.shape_cast %46 : vector<2x16x4xf32> to vector<1x2x16x4xf32>
    %cst_16 = arith.constant dense<0.000000e+00> : vector<1xf32>
    %48 = vector.multi_reduction <add>, %47, %cst_16 [1, 2, 3] : vector<1x2x16x4xf32> to vector<1xf32>
    %49 = vector.shape_cast %48 : vector<1xf32> to vector<1x1x1x1xf32>
    %50 = vector.extract %49[0, 0, 0, 0] : f32 from vector<1x1x1x1xf32>
    %51 = vector.extract_strided_slice %1 {offsets = [0, 0, 0], sizes = [2, 16, 3], strides = [1, 1, 1]} : vector<2x16x4xf32> to vector<2x16x3xf32>
    %cst_17 = arith.constant dense<0xFF800000> : vector<2x16xf32>
    %52 = vector.multi_reduction <maximumf>, %51, %cst_17 [2] : vector<2x16x3xf32> to vector<2x16xf32>
    %53 = vector.shape_cast %52 : vector<2x16xf32> to vector<2x16x1xf32>
    %54 = vector.extract_strided_slice %1 {offsets = [0, 0, 3], sizes = [2, 16, 1], strides = [1, 1, 1]} : vector<2x16x4xf32> to vector<2x16x1xf32>
    %55 = arith.cmpf oge, %53, %54 : vector<2x16x1xf32>
    %56 = arith.extui %55 : vector<2x16x1xi1> to vector<2x16x1xi32>
    %57 = arith.sitofp %56 : vector<2x16x1xi32> to vector<2x16x1xf32>
    %58 = vector.extract_strided_slice %57 {offsets = [0, 0, 0], sizes = [1, 16, 1], strides = [1, 1, 1]} : vector<2x16x1xf32> to vector<1x16x1xf32>
    %59 = vector.shape_cast %58 : vector<1x16x1xf32> to vector<16x1xf32>
    %60 = vector.shape_cast %59 : vector<16x1xf32> to vector<1x16x1xf32>
    %cst_18 = arith.constant dense<0.000000e+00> : vector<1xf32>
    %61 = vector.multi_reduction <add>, %60, %cst_18 [1, 2] : vector<1x16x1xf32> to vector<1xf32>
    %62 = vector.shape_cast %61 : vector<1xf32> to vector<1x1x1xf32>
    %63 = vector.extract %62[0, 0, 0] : f32 from vector<1x1x1xf32>
    %c1 = arith.constant 1 : index
    %64 = memref.load %arg1[%c1] : memref<3xi32, #tpu.memory_space<smem>>
    %65 = arith.sitofp %64 : i32 to f32
    %66 = arith.subf %63, %65 : f32
    %67 = math.absf %66 : f32
    %cst_19 = arith.constant 0.000000e+00 : f32
    %68 = arith.addf %cst_19, %67 : f32
    %69 = vector.extract_strided_slice %57 {offsets = [1, 0, 0], sizes = [1, 16, 1], strides = [1, 1, 1]} : vector<2x16x1xf32> to vector<1x16x1xf32>
    %70 = vector.shape_cast %69 : vector<1x16x1xf32> to vector<16x1xf32>
    %71 = vector.shape_cast %70 : vector<16x1xf32> to vector<1x16x1xf32>
    %cst_20 = arith.constant dense<0.000000e+00> : vector<1xf32>
    %72 = vector.multi_reduction <add>, %71, %cst_20 [1, 2] : vector<1x16x1xf32> to vector<1xf32>
    %73 = vector.shape_cast %72 : vector<1xf32> to vector<1x1x1xf32>
    %74 = vector.extract %73[0, 0, 0] : f32 from vector<1x1x1xf32>
    %c2 = arith.constant 2 : index
    %75 = memref.load %arg1[%c2] : memref<3xi32, #tpu.memory_space<smem>>
    %76 = arith.sitofp %75 : i32 to f32
    %77 = arith.subf %74, %76 : f32
    %78 = math.absf %77 : f32
    %79 = arith.addf %68, %78 : f32
    %cst_21 = arith.constant 2.000000e+00 : f32
    %80 = arith.divf %79, %cst_21 : f32
    %c0_22 = arith.constant 0 : index
    %c0_23 = arith.constant 0 : index
    %c0_24 = arith.constant 0 : index
    %81 = vector.load %arg4[%c0_22, %c0_23, %c0_24] : memref<1x4x128xf32, #tpu.memory_space<vmem>>, vector<1x4x128xf32>
    %82 = vector.shape_cast %81 : vector<1x4x128xf32> to vector<4x128xf32>
    %c0_25 = arith.constant 0 : index
    %c0_26 = arith.constant 0 : index
    %c0_27 = arith.constant 0 : index
    %83 = vector.load %arg5[%c0_25, %c0_26, %c0_27] : memref<1x4x128xf32, #tpu.memory_space<vmem>>, vector<1x4x128xf32>
    %84 = vector.shape_cast %83 : vector<1x4x128xf32> to vector<4x128xf32>
    %85 = tpu.iota {dimensions = array<i32: 1>} : vector<1x128xi32>
    %c0_28 = arith.constant 0 : index
    %86 = memref.load %arg1[%c0_28] : memref<3xi32, #tpu.memory_space<smem>>
    %87 = vector.broadcast %86 : i32 to vector<1x128xi32>
    %88 = arith.cmpi slt, %85, %87 : vector<1x128xi32>
    %89 = arith.extui %88 : vector<1x128xi1> to vector<1x128xi32>
    %90 = arith.sitofp %89 : vector<1x128xi32> to vector<1x128xf32>
    %91 = arith.subf %82, %84 : vector<4x128xf32>
    %92 = math.absf %91 : vector<4x128xf32>
    %93 = vector.broadcast %90 : vector<1x128xf32> to vector<4x128xf32>
    %94 = arith.mulf %92, %93 : vector<4x128xf32>
    %95 = vector.shape_cast %94 : vector<4x128xf32> to vector<1x4x128xf32>
    %cst_29 = arith.constant dense<0.000000e+00> : vector<1xf32>
    %96 = vector.multi_reduction <add>, %95, %cst_29 [1, 2] : vector<1x4x128xf32> to vector<1xf32>
    %97 = vector.shape_cast %96 : vector<1xf32> to vector<1x1x1xf32>
    %98 = vector.extract %97[0, 0, 0] : f32 from vector<1x1x1xf32>
    %99 = vector.extract_strided_slice %82 {offsets = [0, 0], sizes = [1, 128], strides = [1, 1]} : vector<4x128xf32> to vector<1x128xf32>
    %100 = vector.extract_strided_slice %82 {offsets = [1, 0], sizes = [1, 128], strides = [1, 1]} : vector<4x128xf32> to vector<1x128xf32>
    %101 = vector.extract_strided_slice %82 {offsets = [2, 0], sizes = [1, 128], strides = [1, 1]} : vector<4x128xf32> to vector<1x128xf32>
    %102 = vector.extract_strided_slice %82 {offsets = [3, 0], sizes = [1, 128], strides = [1, 1]} : vector<4x128xf32> to vector<1x128xf32>
    %cst_30 = arith.constant 5.000000e-01 : f32
    %103 = vector.broadcast %cst_30 : f32 to vector<1x128xf32>
    %104 = arith.mulf %103, %101 : vector<1x128xf32>
    %105 = arith.subf %99, %104 : vector<1x128xf32>
    %cst_31 = arith.constant 5.000000e-01 : f32
    %106 = vector.broadcast %cst_31 : f32 to vector<1x128xf32>
    %107 = arith.mulf %106, %102 : vector<1x128xf32>
    %108 = arith.subf %100, %107 : vector<1x128xf32>
    %cst_32 = arith.constant 5.000000e-01 : f32
    %109 = vector.broadcast %cst_32 : f32 to vector<1x128xf32>
    %110 = arith.mulf %109, %101 : vector<1x128xf32>
    %111 = arith.addf %99, %110 : vector<1x128xf32>
    %cst_33 = arith.constant 5.000000e-01 : f32
    %112 = vector.broadcast %cst_33 : f32 to vector<1x128xf32>
    %113 = arith.mulf %112, %102 : vector<1x128xf32>
    %114 = arith.addf %100, %113 : vector<1x128xf32>
    %115 = vector.extract_strided_slice %84 {offsets = [0, 0], sizes = [1, 128], strides = [1, 1]} : vector<4x128xf32> to vector<1x128xf32>
    %116 = vector.extract_strided_slice %84 {offsets = [1, 0], sizes = [1, 128], strides = [1, 1]} : vector<4x128xf32> to vector<1x128xf32>
    %117 = vector.extract_strided_slice %84 {offsets = [2, 0], sizes = [1, 128], strides = [1, 1]} : vector<4x128xf32> to vector<1x128xf32>
    %118 = vector.extract_strided_slice %84 {offsets = [3, 0], sizes = [1, 128], strides = [1, 1]} : vector<4x128xf32> to vector<1x128xf32>
    %cst_34 = arith.constant 5.000000e-01 : f32
    %119 = vector.broadcast %cst_34 : f32 to vector<1x128xf32>
    %120 = arith.mulf %119, %117 : vector<1x128xf32>
    %121 = arith.subf %115, %120 : vector<1x128xf32>
    %cst_35 = arith.constant 5.000000e-01 : f32
    %122 = vector.broadcast %cst_35 : f32 to vector<1x128xf32>
    %123 = arith.mulf %122, %118 : vector<1x128xf32>
    %124 = arith.subf %116, %123 : vector<1x128xf32>
    %cst_36 = arith.constant 5.000000e-01 : f32
    %125 = vector.broadcast %cst_36 : f32 to vector<1x128xf32>
    %126 = arith.mulf %125, %117 : vector<1x128xf32>
    %127 = arith.addf %115, %126 : vector<1x128xf32>
    %cst_37 = arith.constant 5.000000e-01 : f32
    %128 = vector.broadcast %cst_37 : f32 to vector<1x128xf32>
    %129 = arith.mulf %128, %118 : vector<1x128xf32>
    %130 = arith.addf %116, %129 : vector<1x128xf32>
    %131 = arith.subf %111, %105 : vector<1x128xf32>
    %132 = arith.subf %114, %108 : vector<1x128xf32>
    %133 = arith.mulf %131, %132 : vector<1x128xf32>
    %134 = arith.subf %127, %121 : vector<1x128xf32>
    %135 = arith.subf %130, %124 : vector<1x128xf32>
    %136 = arith.mulf %134, %135 : vector<1x128xf32>
    %137 = arith.minimumf %111, %127 : vector<1x128xf32>
    %138 = arith.maximumf %105, %121 : vector<1x128xf32>
    %139 = arith.subf %137, %138 : vector<1x128xf32>
    %cst_38 = arith.constant 0.000000e+00 : f32
    %140 = vector.broadcast %cst_38 : f32 to vector<1x128xf32>
    %141 = arith.maximumf %139, %140 : vector<1x128xf32>
    %142 = arith.minimumf %114, %130 : vector<1x128xf32>
    %143 = arith.maximumf %108, %124 : vector<1x128xf32>
    %144 = arith.subf %142, %143 : vector<1x128xf32>
    %cst_39 = arith.constant 0.000000e+00 : f32
    %145 = vector.broadcast %cst_39 : f32 to vector<1x128xf32>
    %146 = arith.maximumf %144, %145 : vector<1x128xf32>
    %147 = arith.mulf %141, %146 : vector<1x128xf32>
    %148 = arith.addf %133, %136 : vector<1x128xf32>
    %149 = arith.subf %148, %147 : vector<1x128xf32>
    %cst_40 = arith.constant 1.000000e-07 : f32
    %150 = vector.broadcast %cst_40 : f32 to vector<1x128xf32>
    %151 = arith.addf %149, %150 : vector<1x128xf32>
    %152 = arith.divf %147, %151 : vector<1x128xf32>
    %153 = arith.maximumf %111, %127 : vector<1x128xf32>
    %154 = arith.minimumf %105, %121 : vector<1x128xf32>
    %155 = arith.subf %153, %154 : vector<1x128xf32>
    %156 = arith.maximumf %114, %130 : vector<1x128xf32>
    %157 = arith.minimumf %108, %124 : vector<1x128xf32>
    %158 = arith.subf %156, %157 : vector<1x128xf32>
    %159 = arith.mulf %155, %158 : vector<1x128xf32>
    %160 = arith.subf %159, %149 : vector<1x128xf32>
    %cst_41 = arith.constant 1.000000e-07 : f32
    %161 = vector.broadcast %cst_41 : f32 to vector<1x128xf32>
    %162 = arith.addf %159, %161 : vector<1x128xf32>
    %163 = arith.divf %160, %162 : vector<1x128xf32>
    %164 = arith.subf %152, %163 : vector<1x128xf32>
    %cst_42 = arith.constant 1.000000e+00 : f32
    %165 = vector.broadcast %cst_42 : f32 to vector<1x128xf32>
    %166 = arith.subf %165, %164 : vector<1x128xf32>
    %167 = arith.mulf %166, %90 : vector<1x128xf32>
    %168 = vector.shape_cast %167 : vector<1x128xf32> to vector<1x1x128xf32>
    %cst_43 = arith.constant dense<0.000000e+00> : vector<1xf32>
    %169 = vector.multi_reduction <add>, %168, %cst_43 [1, 2] : vector<1x1x128xf32> to vector<1xf32>
    %170 = vector.shape_cast %169 : vector<1xf32> to vector<1x1x1xf32>
    %171 = vector.extract %170[0, 0, 0] : f32 from vector<1x1x1xf32>
    %172 = tpu.iota {dimensions = array<i32: 0>} : vector<8x128xi32>
    %173 = tpu.iota {dimensions = array<i32: 1>} : vector<8x128xi32>
    %c0_i32 = arith.constant 0 : i32
    %174 = vector.broadcast %c0_i32 : i32 to vector<8x128xi32>
    %175 = arith.cmpi eq, %172, %174 : vector<8x128xi32>
    %c0_i32_44 = arith.constant 0 : i32
    %176 = vector.broadcast %c0_i32_44 : i32 to vector<8x128xi32>
    %177 = arith.cmpi eq, %173, %176 : vector<8x128xi32>
    %178 = arith.andi %175, %177 : vector<8x128xi1>
    %cst_45 = arith.constant 0.000000e+00 : f32
    %179 = vector.broadcast %50 : f32 to vector<8x128xf32>
    %180 = vector.broadcast %cst_45 : f32 to vector<8x128xf32>
    %181 = arith.select %178, %179, %180 : vector<8x128xi1>, vector<8x128xf32>
    %c1_i32 = arith.constant 1 : i32
    %182 = vector.broadcast %c1_i32 : i32 to vector<8x128xi32>
    %183 = arith.cmpi eq, %173, %182 : vector<8x128xi32>
    %184 = arith.andi %175, %183 : vector<8x128xi1>
    %cst_46 = arith.constant 0.000000e+00 : f32
    %185 = vector.broadcast %80 : f32 to vector<8x128xf32>
    %186 = vector.broadcast %cst_46 : f32 to vector<8x128xf32>
    %187 = arith.select %184, %185, %186 : vector<8x128xi1>, vector<8x128xf32>
    %188 = arith.addf %181, %187 : vector<8x128xf32>
    %c2_i32 = arith.constant 2 : i32
    %189 = vector.broadcast %c2_i32 : i32 to vector<8x128xi32>
    %190 = arith.cmpi eq, %173, %189 : vector<8x128xi32>
    %191 = arith.andi %175, %190 : vector<8x128xi1>
    %cst_47 = arith.constant 0.000000e+00 : f32
    %192 = vector.broadcast %98 : f32 to vector<8x128xf32>
    %193 = vector.broadcast %cst_47 : f32 to vector<8x128xf32>
    %194 = arith.select %191, %192, %193 : vector<8x128xi1>, vector<8x128xf32>
    %195 = arith.addf %188, %194 : vector<8x128xf32>
    %c3_i32 = arith.constant 3 : i32
    %196 = vector.broadcast %c3_i32 : i32 to vector<8x128xi32>
    %197 = arith.cmpi eq, %173, %196 : vector<8x128xi32>
    %198 = arith.andi %175, %197 : vector<8x128xi1>
    %cst_48 = arith.constant 0.000000e+00 : f32
    %199 = vector.broadcast %171 : f32 to vector<8x128xf32>
    %200 = vector.broadcast %cst_48 : f32 to vector<8x128xf32>
    %201 = arith.select %198, %199, %200 : vector<8x128xi1>, vector<8x128xf32>
    %202 = arith.addf %195, %201 : vector<8x128xf32>
    %c0_49 = arith.constant 0 : index
    %c0_50 = arith.constant 0 : index
    %c0_51 = arith.constant 0 : index
    %203 = vector.load %arg6[%c0_49, %c0_50, %c0_51] : memref<1x8x128xf32, #tpu.memory_space<vmem>>, vector<1x8x128xf32>
    %204 = vector.shape_cast %203 : vector<1x8x128xf32> to vector<8x128xf32>
    %205 = vector.shape_cast %202 : vector<8x128xf32> to vector<1x8x128xf32>
    tpu.vector_store %arg6[%c0_49, %c0_50, %c0_51], %205 {strides = array<i32>} : memref<1x8x128xf32, #tpu.memory_space<vmem>>, vector<1x8x128xf32>,
    return
  }
  func.func @transform_0(%arg0: i32, %arg1: memref<3xi32, #tpu.memory_space<smem>>) -> (i32, i32, i32, i32) {
    %c0_i32 = arith.constant 0 : i32
    %c0_i32_0 = arith.constant 0 : i32
    %c0_i32_1 = arith.constant 0 : i32
    %c0_i32_2 = arith.constant 0 : i32
    return %arg0, %c0_i32, %c0_i32_0, %c0_i32_1 : i32, i32, i32, i32
  }
  func.func @transform_1(%arg0: i32, %arg1: memref<3xi32, #tpu.memory_space<smem>>) -> (i32, i32, i32) {
    %c0_i32 = arith.constant 0 : i32
    %c0_i32_0 = arith.constant 0 : i32
    %c0_i32_1 = arith.constant 0 : i32
    return %arg0, %c0_i32, %c0_i32_0 : i32, i32, i32
  }
  func.func @transform_2(%arg0: i32, %arg1: memref<3xi32, #tpu.memory_space<smem>>) -> (i32, i32, i32) {
    %c0_i32 = arith.constant 0 : i32
    %c0_i32_0 = arith.constant 0 : i32
    %c0_i32_1 = arith.constant 0 : i32
    return %arg0, %c0_i32, %c0_i32_0 : i32, i32, i32
  }
  func.func @transform_3(%arg0: i32, %arg1: memref<3xi32, #tpu.memory_space<smem>>) -> (i32, i32, i32) {
    %c0_i32 = arith.constant 0 : i32
    %c0_i32_0 = arith.constant 0 : i32
    %c0_i32_1 = arith.constant 0 : i32
    return %arg0, %c0_i32, %c0_i32_0 : i32, i32, i32
  }
  func.func @transform_4(%arg0: i32, %arg1: memref<3xi32, #tpu.memory_space<smem>>) -> (i32, i32, i32) {
    %c0_i32 = arith.constant 0 : i32
    %c0_i32_0 = arith.constant 0 : i32
    %c0_i32_1 = arith.constant 0 : i32
    return %arg0, %c0_i32, %c0_i32_0 : i32, i32, i32
  }
}

</mosaic_0001>

<llo_original>
// kernel: tpu_custom_call.1
$region0: #{tpu_custom_call.1}
  #allocation0 [shape = 'u32[]', space=smem, size = 0x4, offset = 0x4, fixed_abs, tag = 'smem constant byte address 0x4 - core index']
  #allocation1 [shape = 'u32[144,128]{1,0:T(1,128)}', space=vmem, size = 0x12000, scoped, tag = 'internal scratch']
  #allocation2 [shape = 's32[1]{0}', space=sflag, size = 0x4, scoped, tag = 'scoped memory for tpu_custom_call.1']
  #allocation3 [shape = 'u8[512]{0}', space=smem, size = 0x200, scoped, tag = 'prefetched SMEM operand 0']
  %s0 = inlined_call_operand.vmem [shape: s32[3], index: 0, kind: input, shape index: {}]
  %s1 = inlined_call_operand.vmem [shape: f32[3,2,16,4], index: 1, kind: input, shape index: {}]
  %s2 = inlined_call_operand.vmem [shape: s32[3,2,16], index: 2, kind: input, shape index: {}]
  %s3 = inlined_call_operand.vmem [shape: f32[3,4,128], index: 3, kind: input, shape index: {}]
  %s4 = inlined_call_operand.vmem [shape: f32[3,4,128], index: 4, kind: input, shape index: {}]
  %s5 = inlined_call_operand.hbm [shape: f32[3,8,128], index: 5, kind: output, shape index: {}]
  %s6 = sld [smem:[#allocation0]]
  $region49: #{tpu_custom_call.1} parent=0
    _
  %s8 = ssub.s32 1, %s6
  %s9 = scalar_select 0, %s8, %s6
  %s10 = sshll.u32 %s0, 4
  %s11 = int_to_ptr.vmem [resolvable:$true] %s10
  %13 = dma.vmem_to_smem %s11, 16, [#allocation3], [#allocation2]
  %14 = dma.done [#allocation2], 16
  %15 = sfence
  $region1: #{tpu_custom_call.1} parent=0
    #allocation4 [shape = 'u8[8192]{0}', space=vmem, size = 0x2000, scoped, tag = 'output window, operand 0']
    #allocation5 [shape = 's32[2]{0}', space=sflag, size = 0x8, scoped, tag = 'scoped memory for tpu_custom_call.1']
    %16 = vsyncpa [#allocation5], 0
    %s17 = scalar_lea.sflag [#allocation5], 1
    %18 = vsyncpa %s17, 0
    loop: start=0, step=1, limit=5
    $region2: #{tpu_custom_call.1} parent=1 // loop_pre_header
      _
    $region3: #{tpu_custom_call.1} parent=1 // loop_header
      %s20 = sphi 0, %s24
      %p21 = scmp.ge.s32.totalorder %s20, 5
      %s30 = sphi 0, %s32
      %s33 = sphi 0, %s30
      %s34 = sphi 0, %s33
      %s50 = sphi 0, %s34
      %s56 = sphi 0, %s58
      %s59 = sphi 0, %s56
      %s60 = sphi 0, %s59
      %s76 = sphi 0, %s60
      %s82 = sphi 0, %s84
      %s85 = sphi 0, %s82
      %s86 = sphi 0, %s85
      %s102 = sphi 0, %s86
      %s108 = sphi 0, %s110
      %s111 = sphi 0, %s108
      %s112 = sphi 0, %s111
      %s128 = sphi 0, %s112
      %s134 = sphi 0, %s136
      %s137 = sphi 0, %s134
      %s138 = sphi 0, %s137
      %s154 = sphi 0, %s138
    $region4: #{tpu_custom_call.1} parent=1 // loop_header_branch
      %23 = sbr.rel (%p21) target = $region8
    $region5: #{tpu_custom_call.1} parent=1 // loop_body
      %s25 = ssub.s32 %s20, 1
      %s26 = ssub.s32 %s20, 2
      %s27 = sadd.s32 %s20, 1
      %s28 = ssub.s32 %s20, %s27
      %p29 = scmp.eq.s32.totalorder %s28, 0
      %s31 = sadd.s32 %s30, 1
      %s32 = scalar_select %p29, %s30, %s31
      %p35 = pneg %p29
      %p36 = scmp.eq.s32.totalorder %s20, 2
      %p37 = por %p35, %p36
      %p38 = scmp.ne.s32.totalorder %s30, %s33
      %p39 = scmp.eq.s32.totalorder %s20, 0
      %p40 = por %p38, %p39
      %p41 = scmp.ne.s32.totalorder %s30, %s33
      %p42 = scmp.eq.s32.totalorder %s25, 2
      %p43 = por %p41, %p42
      %p44 = scmp.ne.s32.totalorder %s33, %s34
      %p45 = scmp.eq.s32.totalorder %s25, 0
      %p46 = por %p44, %p45
      %p47 = scmp.ne.s32.totalorder %s33, %s34
      %p48 = scmp.eq.s32.totalorder %s26, 2
      %p49 = por %p47, %p48
      %p51 = scmp.ne.s32.totalorder %s34, %s50
      %p52 = scmp.eq.s32.totalorder %s26, 0
      %p53 = por %p51, %p52
      %s54 = ssub.s32 %s20, %s27
      %p55 = scmp.eq.s32.totalorder %s54, 0
      %s57 = sadd.s32 %s56, 1
      %s58 = scalar_select %p55, %s56, %s57
      %p61 = pneg %p55
      %p62 = scmp.eq.s32.totalorder %s20, 2
      %p63 = por %p61, %p62
      %p64 = scmp.ne.s32.totalorder %s56, %s59
      %p65 = scmp.eq.s32.totalorder %s20, 0
      %p66 = por %p64, %p65
      %p67 = scmp.ne.s32.totalorder %s56, %s59
      %p68 = scmp.eq.s32.totalorder %s25, 2
      %p69 = por %p67, %p68
      %p70 = scmp.ne.s32.totalorder %s59, %s60
      %p71 = scmp.eq.s32.totalorder %s25, 0
      %p72 = por %p70, %p71
      %p73 = scmp.ne.s32.totalorder %s59, %s60
      %p74 = scmp.eq.s32.totalorder %s26, 2
      %p75 = por %p73, %p74
      %p77 = scmp.ne.s32.totalorder %s60, %s76
      %p78 = scmp.eq.s32.totalorder %s26, 0
      %p79 = por %p77, %p78
      %s80 = ssub.s32 %s20, %s27
      %p81 = scmp.eq.s32.totalorder %s80, 0
      %s83 = sadd.s32 %s82, 1
      %s84 = scalar_select %p81, %s82, %s83
      %p87 = pneg %p81
      %p88 = scmp.eq.s32.totalorder %s20, 2
      %p89 = por %p87, %p88
      %p90 = scmp.ne.s32.totalorder %s82, %s85
      %p91 = scmp.eq.s32.totalorder %s20, 0
      %p92 = por %p90, %p91
      %p93 = scmp.ne.s32.totalorder %s82, %s85
      %p94 = scmp.eq.s32.totalorder %s25, 2
      %p95 = por %p93, %p94
      %p96 = scmp.ne.s32.totalorder %s85, %s86
      %p97 = scmp.eq.s32.totalorder %s25, 0
      %p98 = por %p96, %p97
      %p99 = scmp.ne.s32.totalorder %s85, %s86
      %p100 = scmp.eq.s32.totalorder %s26, 2
      %p101 = por %p99, %p100
      %p103 = scmp.ne.s32.totalorder %s86, %s102
      %p104 = scmp.eq.s32.totalorder %s26, 0
      %p105 = por %p103, %p104
      %s106 = ssub.s32 %s20, %s27
      %p107 = scmp.eq.s32.totalorder %s106, 0
      %s109 = sadd.s32 %s108, 1
      %s110 = scalar_select %p107, %s108, %s109
      %p113 = pneg %p107
      %p114 = scmp.eq.s32.totalorder %s20, 2
      %p115 = por %p113, %p114
      %p116 = scmp.ne.s32.totalorder %s108, %s111
      %p117 = scmp.eq.s32.totalorder %s20, 0
      %p118 = por %p116, %p117
      %p119 = scmp.ne.s32.totalorder %s108, %s111
      %p120 = scmp.eq.s32.totalorder %s25, 2
      %p121 = por %p119, %p120
      %p122 = scmp.ne.s32.totalorder %s111, %s112
      %p123 = scmp.eq.s32.totalorder %s25, 0
      %p124 = por %p122, %p123
      %p125 = scmp.ne.s32.totalorder %s111, %s112
      %p126 = scmp.eq.s32.totalorder %s26, 2
      %p127 = por %p125, %p126
      %p129 = scmp.ne.s32.totalorder %s112, %s128
      %p130 = scmp.eq.s32.totalorder %s26, 0
      %p131 = por %p129, %p130
      %s132 = ssub.s32 %s20, %s27
      %p133 = scmp.eq.s32.totalorder %s132, 0
      %s135 = sadd.s32 %s134, 1
      %s136 = scalar_select %p133, %s134, %s135
      %p139 = pneg %p133
      %p140 = scmp.eq.s32.totalorder %s20, 2
      %p141 = por %p139, %p140
      %p142 = scmp.ne.s32.totalorder %s134, %s137
      %p143 = scmp.eq.s32.totalorder %s20, 0
      %p144 = por %p142, %p143
      %p145 = scmp.ne.s32.totalorder %s134, %s137
      %p146 = scmp.eq.s32.totalorder %s25, 2
      %p147 = por %p145, %p146
      %p148 = scmp.ne.s32.totalorder %s137, %s138
      %p149 = scmp.eq.s32.totalorder %s25, 0
      %p150 = por %p148, %p149
      %p151 = scmp.ne.s32.totalorder %s137, %s138
      %p152 = scmp.eq.s32.totalorder %s26, 2
      %p153 = por %p151, %p152
      %p155 = scmp.ne.s32.totalorder %s138, %s154
      %p156 = scmp.eq.s32.totalorder %s26, 0
      %p157 = por %p155, %p156
      %p158 = scmp.le.s32.totalorder 1, %s20
      %p159 = scmp.lt.s32.totalorder %s20, 4
      %p160 = pnand %p158, %p159
      %p161 = pneg %p160
      // Predicated region
      $region9: #{tpu_custom_call.1} parent=5 // pred_check
        _
      $region10: #{tpu_custom_call.1} parent=5 // pred_check_branch
        %163 = sbr.rel (%p160) target = $region12
      $region11: #{tpu_custom_call.1} parent=5 // pred_region
        %s164 = ssub.s32 %s20, 1
      $region12: #{tpu_custom_call.1} parent=5 // pred_fallthru
        _
      %p165 = scmp.lt.s32.totalorder %s20, 3
      // Predicated region
      $region13: #{tpu_custom_call.1} parent=5 // pred_check
        %p166 = pneg %p165
      $region14: #{tpu_custom_call.1} parent=5 // pred_check_branch
        %168 = sbr.rel (%p166) target = $region16
      $region15: #{tpu_custom_call.1} parent=5 // pred_region
        // Predicated region
        $region17: #{tpu_custom_call.1} parent=15 // pred_check
          %p169 = pneg %p40
        $region18: #{tpu_custom_call.1} parent=15 // pred_check_branch
          %171 = sbr.rel (%p169) target = $region20
        $region19: #{tpu_custom_call.1} parent=15 // pred_region
          %p172 = scmp.lt.s32.totalorder %s20, 2
          %s173 = scalar_select %p172, %s20, 2
          %s174 = smul.addr %s173, 4
          %s175 = smul.addr %s174, 8
          %s176 = scalar_lea.vmem %s1, %s175
        $region20: #{tpu_custom_call.1} parent=15 // pred_fallthru
          _
        // Predicated region
        $region21: #{tpu_custom_call.1} parent=15 // pred_check
          %p177 = pneg %p66
        $region22: #{tpu_custom_call.1} parent=15 // pred_check_branch
          %179 = sbr.rel (%p177) target = $region24
        $region23: #{tpu_custom_call.1} parent=15 // pred_region
          %p180 = scmp.lt.s32.totalorder %s20, 2
          %s181 = scalar_select %p180, %s20, 2
          %s182 = smul.addr %s181, 2
          %s183 = scalar_lea.vmem %s2, %s182
        $region24: #{tpu_custom_call.1} parent=15 // pred_fallthru
          _
        // Predicated region
        $region25: #{tpu_custom_call.1} parent=15 // pred_check
          %p184 = pneg %p92
        $region26: #{tpu_custom_call.1} parent=15 // pred_check_branch
          %186 = sbr.rel (%p184) target = $region28
        $region27: #{tpu_custom_call.1} parent=15 // pred_region
          %p187 = scmp.lt.s32.totalorder %s20, 2
          %s188 = scalar_select %p187, %s20, 2
          %s189 = smul.addr %s188, 4
          %s190 = scalar_lea.vmem %s3, %s189
        $region28: #{tpu_custom_call.1} parent=15 // pred_fallthru
          _
        // Predicated region
        $region29: #{tpu_custom_call.1} parent=15 // pred_check
          %p191 = pneg %p118
        $region30: #{tpu_custom_call.1} parent=15 // pred_check_branch
          %193 = sbr.rel (%p191) target = $region32
        $region31: #{tpu_custom_call.1} parent=15 // pred_region
          %p194 = scmp.lt.s32.totalorder %s20, 2
          %s195 = scalar_select %p194, %s20, 2
          %s196 = smul.addr %s195, 4
          %s197 = scalar_lea.vmem %s4, %s196
        $region32: #{tpu_custom_call.1} parent=15 // pred_fallthru
          _
      $region16: #{tpu_custom_call.1} parent=5 // pred_fallthru
        _
      %p198 = scmp.le.s32.totalorder 1, %s20
      %p199 = scmp.lt.s32.totalorder %s20, 4
      %p200 = pnand %p198, %p199
      %p201 = pneg %p200
      // Predicated region
      $region33: #{tpu_custom_call.1} parent=5 // pred_check
        _
      $region34: #{tpu_custom_call.1} parent=5 // pred_check_branch
        %203 = sbr.rel (%p200) target = $region36
      $region35: #{tpu_custom_call.1} parent=5 // pred_region
        %s204 = ssub.s32 %s20, 1
        %p205 = scmp.lt.s32.totalorder %s25, 2
        %s206 = scalar_select %p205, %s25, 2
        %s207 = smul.addr %s206, 4
        %s208 = smul.addr %s207, 8
        %s209 = scalar_lea.vmem %s1, %s208
        %p210 = pneg %p46
        %p211 = pneg %p43
        %p212 = scmp.lt.s32.totalorder %s25, 2
        %s213 = scalar_select %p212, %s25, 2
        %s214 = smul.addr %s213, 2
        %s215 = scalar_lea.vmem %s2, %s214
        %p216 = pneg %p72
        %p217 = pneg %p69
        %p218 = scmp.lt.s32.totalorder %s25, 2
        %s219 = scalar_select %p218, %s25, 2
        %s220 = smul.addr %s219, 4
        %s221 = scalar_lea.vmem %s3, %s220
        %p222 = pneg %p98
        %p223 = pneg %p95
        %p224 = scmp.lt.s32.totalorder %s25, 2
        %s225 = scalar_select %p224, %s25, 2
        %s226 = smul.addr %s225, 4
        %s227 = scalar_lea.vmem %s4, %s226
        %p228 = pneg %p124
        %p229 = pneg %p121
        %p230 = pneg %p150
        %p231 = pneg %p147
        %s232 = sand.u32 %s137, 1
        %s233 = scalar_lea.sflag [#allocation5], %s232
        %s234 = sand.u32 %s137, 1
        %s235 = smul.addr %s234, 8
        %s236 = scalar_lea.vmem [#allocation4], %s235
        %p237 = scmp.lt.s32.totalorder %s25, 2
        %s238 = scalar_select %p237, %s25, 2
        %s239 = smul.addr %s238, 4
        %s240 = smul.addr %s239, 8
        %s241 = scalar_lea.vmem %s1, %s240
        %p242 = scmp.lt.s32.totalorder %s25, 2
        %s243 = scalar_select %p242, %s25, 2
        %s244 = smul.addr %s243, 2
        %s245 = scalar_lea.vmem %s2, %s244
        %p246 = scmp.lt.s32.totalorder %s25, 2
        %s247 = scalar_select %p246, %s25, 2
        %s248 = smul.addr %s247, 4
        %s249 = scalar_lea.vmem %s3, %s248
        %p250 = scmp.lt.s32.totalorder %s25, 2
        %s251 = scalar_select %p250, %s25, 2
        %s252 = smul.addr %s251, 4
        %s253 = scalar_lea.vmem %s4, %s252
        %v254 = vld [vmem:[%s241] sm:$0xff]
        %v255 = vld [vmem:[%s241 + $0x8] sm:$0xff]
        %v256 = vld [vmem:[%s241 + $0x10] sm:$0xff]
        %v257 = vld [vmem:[%s241 + $0x18] sm:$0xff]
        %v258 = vld [vmem:[%s245] sm:$0x3]
        %v259 = vlaneseq
        %v260 = vand.u32 %v259, 127
        %v261 = vlaneseq
        %v262 = vshrl.u32 %v261, 7
        %v263 = vsub.s32 0, %v262
        %v264 = vrot.slane %v258, %v263
        %266 = vbcast.lane.b32.xlu0 %v264, 256
        %v267 = vpop.permute.xlu0 %266
        %s269 = sor.u32 256, 8
        %270 = vbcast.lane.b32.xlu0 %v264, %s269
        %v271 = vpop.permute.xlu0 %270
        %v272 = vlaneseq
        %v273 = vshrl.u32 %v272, 7
        %v274 = vsub.s32 1, %v273
        %v275 = vrot.slane %v258, %v274
        %277 = vbcast.lane.b32.xlu0 %v275, 256
        %v278 = vpop.permute.xlu0 %277
        %s280 = sor.u32 256, 8
        %281 = vbcast.lane.b32.xlu0 %v275, %s280
        %v282 = vpop.permute.xlu0 %281
        %vm283 = vcmp.eq.s32.totalorder %v260, %v267
        %vm284 = vcmp.eq.s32.totalorder %v260, %v271
        %vm285 = vcmp.eq.s32.totalorder %v260, %v278
        %vm286 = vcmp.eq.s32.totalorder %v260, %v282
        %v287 = vsel %vm283, 1, 0
        %v288 = vsel %vm284, 1, 0
        %v289 = vsel %vm285, 1, 0
        %v290 = vsel %vm286, 1, 0
        %v291 = vcvt.s32.f32 %v287
        %v292 = vcvt.s32.f32 %v288
        %v293 = vcvt.s32.f32 %v289
        %v294 = vcvt.s32.f32 %v290
        %v295 = vand.u32 2147483647, %v254
        %v296 = vand.u32 2147483647, %v255
        %v297 = vand.u32 2147483647, %v256
        %v298 = vand.u32 2147483647, %v257
        %v299 = vsub.f32 0.0, %v295
        %v300 = vsub.f32 0.0, %v296
        %v301 = vsub.f32 0.0, %v297
        %v302 = vsub.f32 0.0, %v298
        %v303 = vmul.f32 %v299, 1.442695
        %v304 = vpow.pop %v303
        %v305 = vmul.f32 %v300, 1.442695
        %v306 = vpow.pop %v305
        %v307 = vmul.f32 %v301, 1.442695
        %v308 = vpow.pop %v307
        %v309 = vmul.f32 %v302, 1.442695
        %v310 = vpow.pop %v309
        %v311 = vmax.f32 %v254, 0.0
        %v312 = vmax.f32 %v255, 0.0
        %v313 = vmax.f32 %v256, 0.0
        %v314 = vmax.f32 %v257, 0.0
        %v315 = vmul.f32 %v254, %v291
        %v316 = vmul.f32 %v255, %v292
        %v317 = vmul.f32 %v256, %v293
        %v318 = vmul.f32 %v257, %v294
        %v319 = vsub.f32 %v311, %v315
        %v320 = vsub.f32 %v312, %v316
        %v321 = vsub.f32 %v313, %v317
        %v322 = vsub.f32 %v314, %v318
        %v323 = vadd.f32 %v304, 1.0
        %v324 = vlog2.pop %v323
        %v325 = vmul.f32 %v324, 0.6931472
        %v326 = vmul.f32 -0.5, %v304
        %v327 = vadd.f32 %v326, 1.0
        %v328 = vmul.f32 %v327, %v304
        %v329 = vand.u32 2147483647, %v304
        %vm330 = vcmp.lt.f32.partialorder %v329, 0.0004427343
        %v331 = vsel %vm330, %v328, %v325
        %v332 = vadd.f32 %v306, 1.0
        %v333 = vlog2.pop %v332
        %v334 = vmul.f32 %v333, 0.6931472
        %v335 = vmul.f32 -0.5, %v306
        %v336 = vadd.f32 %v335, 1.0
        %v337 = vmul.f32 %v336, %v306
        %v338 = vand.u32 2147483647, %v306
        %vm339 = vcmp.lt.f32.partialorder %v338, 0.0004427343
        %v340 = vsel %vm339, %v337, %v334
        %v341 = vadd.f32 %v308, 1.0
        %v342 = vlog2.pop %v341
        %v343 = vmul.f32 %v342, 0.6931472
        %v344 = vmul.f32 -0.5, %v308
        %v345 = vadd.f32 %v344, 1.0
        %v346 = vmul.f32 %v345, %v308
        %v347 = vand.u32 2147483647, %v308
        %vm348 = vcmp.lt.f32.partialorder %v347, 0.0004427343
        %v349 = vsel %vm348, %v346, %v343
        %v350 = vadd.f32 %v310, 1.0
        %v351 = vlog2.pop %v350
        %v352 = vmul.f32 %v351, 0.6931472
        %v353 = vmul.f32 -0.5, %v310
        %v354 = vadd.f32 %v353, 1.0
        %v355 = vmul.f32 %v354, %v310
        %v356 = vand.u32 2147483647, %v310
        %vm357 = vcmp.lt.f32.partialorder %v356, 0.0004427343
        %v358 = vsel %vm357, %v355, %v352
        %v359 = vadd.f32 %v319, %v331
        %v360 = vadd.f32 %v320, %v340
        %v361 = vadd.f32 %v321, %v349
        %v362 = vadd.f32 %v322, %v358
        %v363 = vadd.f32 %v304, 1.0
        %v364 = vadd.f32 %v306, 1.0
        %v365 = vadd.f32 %v308, 1.0
        %v366 = vadd.f32 %v310, 1.0
        %v367 = vrcp.pop %v363
        %v368 = vrcp.pop %v364
        %v369 = vrcp.pop %v365
        %v370 = vrcp.pop %v366
        %vm371 = vcmp.ge.f32.partialorder %v254, 0.0
        %vm372 = vcmp.ge.f32.partialorder %v255, 0.0
        %vm373 = vcmp.ge.f32.partialorder %v256, 0.0
        %vm374 = vcmp.ge.f32.partialorder %v257, 0.0
        %v375 = vsel %vm371, 1.0, %v304
        %v376 = vsel %vm372, 1.0, %v306
        %v377 = vsel %vm373, 1.0, %v308
        %v378 = vsel %vm374, 1.0, %v310
        %v379 = vmul.f32 %v375, %v367
        %v380 = vmul.f32 %v376, %v368
        %v381 = vmul.f32 %v377, %v369
        %v382 = vmul.f32 %v378, %v370
        %v383 = vmul.f32 %v379, %v291
        %v384 = vmul.f32 %v380, %v292
        %v385 = vmul.f32 %v381, %v293
        %v386 = vmul.f32 %v382, %v294
        %v387 = vsub.f32 1.0, %v379
        %v388 = vsub.f32 1.0, %v380
        %v389 = vsub.f32 1.0, %v381
        %v390 = vsub.f32 1.0, %v382
        %v391 = vsub.f32 1.0, %v291
        %v392 = vsub.f32 1.0, %v292
        %v393 = vsub.f32 1.0, %v293
        %v394 = vsub.f32 1.0, %v294
        %v395 = vmul.f32 %v387, %v391
        %v396 = vmul.f32 %v388, %v392
        %v397 = vmul.f32 %v389, %v393
        %v398 = vmul.f32 %v390, %v394
        %v399 = vadd.f32 %v383, %v395
        %v400 = vadd.f32 %v384, %v396
        %v401 = vadd.f32 %v385, %v397
        %v402 = vadd.f32 %v386, %v398
        %v403 = vsub.f32 1.0, %v399
        %v404 = vsub.f32 1.0, %v400
        %v405 = vsub.f32 1.0, %v401
        %v406 = vsub.f32 1.0, %v402
        %v407 = vmul.f32 %v359, %v403
        %v408 = vmul.f32 %v360, %v404
        %v409 = vmul.f32 %v361, %v405
        %v410 = vmul.f32 %v362, %v406
        %v411 = vmul.f32 %v407, %v403
        %v412 = vmul.f32 %v408, %v404
        %v413 = vmul.f32 %v409, %v405
        %v414 = vmul.f32 %v410, %v406
        %v415 = vmul.f32 %v291, 0.25
        %v416 = vmul.f32 %v292, 0.25
        %v417 = vmul.f32 %v293, 0.25
        %v418 = vmul.f32 %v294, 0.25
        %v419 = vmul.f32 %v391, 0.75
        %v420 = vmul.f32 %v392, 0.75
        %v421 = vmul.f32 %v393, 0.75
        %v422 = vmul.f32 %v394, 0.75
        %v423 = vadd.f32 %v415, %v419
        %v424 = vadd.f32 %v416, %v420
        %v425 = vadd.f32 %v417, %v421
        %v426 = vadd.f32 %v418, %v422
        %v427 = vmul.f32 %v423, %v411
        %v428 = vmul.f32 %v424, %v412
        %v429 = vmul.f32 %v425, %v413
        %v430 = vmul.f32 %v426, %v414
        %vm431 = vcmask 31744
        %v432 = vsel %vm431, %v427, 0.0
        %v433 = vsel %vm431, %v428, 0.0
        %v434 = vadd.f32 %v432, %v433
        %v435 = vsel %vm431, %v429, 0.0
        %v436 = vadd.f32 %v434, %v435
        %v437 = vsel %vm431, %v430, 0.0
        %v438 = vadd.f32 %v436, %v437
        %439 = vadd.xlane.f32.xlu0 %v438
        %v440 = vpop.xlane.xlu0 %439
        %v441 = vrot.slane %v440, 4
        %v442 = vadd.f32 %v440, %v441
        %v443 = vrot.slane %v442, 2
        %v444 = vadd.f32 %v442, %v443
        %v445 = vrot.slane %v444, 1
        %v446 = vadd.f32 %v444, %v445
        %s447 = vtos %v446
        %vm448 = vcmask 23552
        %v449 = vsel %vm448, %v254, -inf
        %450 = vmax.xlane.f32.xlu0 %v449
        %v451 = vpop.xlane.xlu0 %450
        %v452 = vsel %vm448, %v255, -inf
        %453 = vmax.xlane.f32.xlu0 %v452
        %v454 = vpop.xlane.xlu0 %453
        %v455 = vsel %vm448, %v256, -inf
        %456 = vmax.xlane.f32.xlu0 %v455
        %v457 = vpop.xlane.xlu0 %456
        %v458 = vsel %vm448, %v257, -inf
        %459 = vmax.xlane.f32.xlu0 %v458
        %v460 = vpop.xlane.xlu0 %459
        %vm461 = vcmp.ge.f32.partialorder %v451, %v254
        %vm462 = vcmp.ge.f32.partialorder %v454, %v255
        %vm463 = vcmp.ge.f32.partialorder %v457, %v256
        %vm464 = vcmp.ge.f32.partialorder %v460, %v257
        %v465 = vsel %vm461, 1, 0
        %v466 = vsel %vm462, 1, 0
        %v467 = vsel %vm463, 1, 0
        %v468 = vsel %vm464, 1, 0
        %v469 = vcvt.s32.f32 %v465
        %v470 = vcvt.s32.f32 %v466
        %v471 = vcvt.s32.f32 %v467
        %v472 = vcvt.s32.f32 %v468
        %475 = vrot.lane.b32.xlu0 %v469, 125
        %v476 = vpop.permute.xlu0 %475
        %477 = vrot.lane.b32.xlu0 %v470, 125
        %v478 = vpop.permute.xlu0 %477
        %vm481 = vcmask 7168
        %v482 = vsel %vm481, %v476, 0.0
        %v483 = vsel %vm481, %v478, 0.0
        %v484 = vadd.f32 %v482, %v483
        %485 = vadd.xlane.f32.xlu0 %v484
        %v486 = vpop.xlane.xlu0 %485
        %v487 = vrot.slane %v486, 4
        %v488 = vadd.f32 %v486, %v487
        %v489 = vrot.slane %v488, 2
        %v490 = vadd.f32 %v488, %v489
        %v491 = vrot.slane %v490, 1
        %v492 = vadd.f32 %v490, %v491
        %s493 = vtos %v492
        %s494 = sld [smem:[#allocation3 + $0x1]]
        %s495 = scvt.s32.f32 %s494
        %s496 = ssub.f32 %s493, %s495
        %s497 = sand.u32 2147483647, %s496
        %s498 = sadd.f32 %s497, 0.0
        %501 = vrot.lane.b32.xlu0 %v471, 125
        %v502 = vpop.permute.xlu0 %501
        %503 = vrot.lane.b32.xlu0 %v472, 125
        %v504 = vpop.permute.xlu0 %503
        %v507 = vsel %vm481, %v502, 0.0
        %v508 = vsel %vm481, %v504, 0.0
        %v509 = vadd.f32 %v507, %v508
        %510 = vadd.xlane.f32.xlu0 %v509
        %v511 = vpop.xlane.xlu0 %510
        %v512 = vrot.slane %v511, 4
        %v513 = vadd.f32 %v511, %v512
        %v514 = vrot.slane %v513, 2
        %v515 = vadd.f32 %v513, %v514
        %v516 = vrot.slane %v515, 1
        %v517 = vadd.f32 %v515, %v516
        %s518 = vtos %v517
        %s519 = sld [smem:[#allocation3 + $0x2]]
        %s520 = scvt.s32.f32 %s519
        %s521 = ssub.f32 %s518, %s520
        %s522 = sand.u32 2147483647, %s521
        %s523 = sadd.f32 %s498, %s522
        %v524 = vrcp.pop 2.0
        %s525 = vtos %v524
        %s526 = smul.f32 %s523, %s525
        %v527 = vld [vmem:[%s249] sm:$0xf]
        %v528 = vld [vmem:[%s253] sm:$0xf]
        %s529 = sld [smem:[#allocation3]]
        %v530 = vstv %s529
        %vm531 = vcmp.lt.s32.totalorder %v260, %v530
        %v532 = vsel %vm531, 1, 0
        %v533 = vcvt.s32.f32 %v532
        %v534 = vsub.f32 %v527, %v528
        %v535 = vand.u32 2147483647, %v534
        %v536 = vmul.f32 %v535, %v533
        %vm537 = vcmask 1043456
        %v538 = vsel %vm537, %v536, 0.0
        %539 = vadd.xlane.f32.xlu0 %v538
        %v540 = vpop.xlane.xlu0 %539
        %v541 = vrot.slane %v540, 4
        %v542 = vadd.f32 %v540, %v541
        %v543 = vrot.slane %v542, 2
        %v544 = vadd.f32 %v542, %v543
        %v545 = vrot.slane %v544, 1
        %v546 = vadd.f32 %v544, %v545
        %s547 = vtos %v546
        %v548 = vmul.f32 %v527, 0.5
        %v550 = vrot.slane %v548, 2
        %v552 = vsub.f32 %v527, %v550
        %v553 = vadd.f32 %v527, %v550
        %v554 = vmul.f32 %v528, 0.5
        %v556 = vrot.slane %v554, 2
        %v558 = vsub.f32 %v528, %v556
        %v559 = vadd.f32 %v528, %v556
        %v560 = vsub.f32 %v553, %v552
        %v562 = vrot.slane %v560, 1
        %v564 = vmul.f32 %v560, %v562
        %v565 = vsub.f32 %v559, %v558
        %v567 = vrot.slane %v565, 1
        %v569 = vmul.f32 %v565, %v567
        %v570 = vmin.f32 %v553, %v559
        %v571 = vmax.f32 %v552, %v558
        %v572 = vsub.f32 %v570, %v571
        %v573 = vmax.f32 %v572, 0.0
        %v575 = vrot.slane %v573, 1
        %v577 = vmul.f32 %v573, %v575
        %v578 = vadd.f32 %v564, %v569
        %v579 = vsub.f32 %v578, %v577
        %v580 = vadd.f32 %v579, 1e-07
        %v581 = vrcp.pop %v580
        %v582 = vmul.f32 %v577, %v581
        %v583 = vmax.f32 %v553, %v559
        %v584 = vmin.f32 %v552, %v558
        %v585 = vsub.f32 %v583, %v584
        %v587 = vrot.slane %v585, 1
        %v589 = vmul.f32 %v585, %v587
        %v590 = vsub.f32 %v589, %v579
        %v591 = vadd.f32 %v589, 1e-07
        %v592 = vrcp.pop %v591
        %v593 = vmul.f32 %v590, %v592
        %v594 = vsub.f32 %v582, %v593
        %v595 = vsub.f32 1.0, %v594
        %v596 = vmul.f32 %v595, %v533
        %vm597 = vcmask 1040384
        %v598 = vsel %vm597, %v596, 0.0
        %599 = vadd.xlane.f32.xlu0 %v598
        %v600 = vpop.xlane.xlu0 %599
        %v601 = vrot.slane %v600, 4
        %v602 = vadd.f32 %v600, %v601
        %v603 = vrot.slane %v602, 2
        %v604 = vadd.f32 %v602, %v603
        %v605 = vrot.slane %v604, 1
        %v606 = vadd.f32 %v604, %v605
        %s607 = vtos %v606
        %v608 = vlaneseq
        %v609 = vshrl.u32 %v608, 7
        %vm610 = vcmp.eq.s32.totalorder %v609, 0
        %vm611 = vcmp.eq.s32.totalorder %v260, 0
        %vm612 = vmand %vm610, %vm611
        %v613 = vstv %s447
        %v614 = vsel %vm612, %v613, 0.0
        %vm615 = vcmp.eq.s32.totalorder %v260, 1
        %vm616 = vmand %vm610, %vm615
        %v617 = vstv %s526
        %v618 = vsel %vm616, %v617, 0.0
        %v619 = vadd.f32 %v614, %v618
        %vm620 = vcmp.eq.s32.totalorder %v260, 2
        %vm621 = vmand %vm610, %vm620
        %v622 = vstv %s547
        %v623 = vsel %vm621, %v622, 0.0
        %v624 = vadd.f32 %v619, %v623
        %vm625 = vcmp.eq.s32.totalorder %v260, 3
        %vm626 = vmand %vm610, %vm625
        %v627 = vstv %s607
        %v628 = vsel %vm626, %v627, 0.0
        %v629 = vadd.f32 %v624, %v628
        %630 = vst [vmem:[%s236] sm:$0xff] %v629
        %s631 = sand.u32 %s137, 1
        %s632 = scalar_lea.sflag [#allocation5], %s631
        %s633 = sand.u32 %s137, 1
        %s634 = smul.addr %s633, 8
        %s635 = scalar_lea.vmem [#allocation4], %s634
        // Predicated region
        $region37: #{tpu_custom_call.1} parent=35 // pred_check
          %p636 = pneg %p147
        $region38: #{tpu_custom_call.1} parent=35 // pred_check_branch
          %638 = sbr.rel (%p636) target = $region40
        $region39: #{tpu_custom_call.1} parent=35 // pred_region
          %s640 = ssub.s32 128, 128
          %641 = vsyncadd %s632, %s640
          %s642 = smul.addr %s25, 128
          %s643 = scalar_lea.hbm %s5, %s642
          %s645 = sshll.u32 %s635, 4
          %s646 = int_to_ptr.vmem [resolvable:$true] %s645
          %648 = dma.vmem_to_hbm [thread:$0]  %s646, 128, %s643, %s632
        $region40: #{tpu_custom_call.1} parent=35 // pred_fallthru
          _
      $region36: #{tpu_custom_call.1} parent=5 // pred_fallthru
        _
      %p649 = scmp.le.s32.totalorder 2, %s20
      // Predicated region
      $region41: #{tpu_custom_call.1} parent=5 // pred_check
        %p650 = pneg %p649
      $region42: #{tpu_custom_call.1} parent=5 // pred_check_branch
        %652 = sbr.rel (%p650) target = $region44
      $region43: #{tpu_custom_call.1} parent=5 // pred_region
        %s653 = ssub.s32 %s20, 2
        // Predicated region
        $region45: #{tpu_custom_call.1} parent=43 // pred_check
          %p654 = pneg %p153
        $region46: #{tpu_custom_call.1} parent=43 // pred_check_branch
          %656 = sbr.rel (%p654) target = $region48
        $region47: #{tpu_custom_call.1} parent=43 // pred_region
          %s657 = sand.u32 %s138, 1
          %s658 = scalar_lea.sflag [#allocation5], %s657
          %s659 = sand.u32 %s138, 1
          %s660 = smul.addr %s659, 8
          %s661 = scalar_lea.vmem [#allocation4], %s660
          %662 = dma.done %s658, 128
        $region48: #{tpu_custom_call.1} parent=43 // pred_fallthru
          _
      $region44: #{tpu_custom_call.1} parent=5 // pred_fallthru
        _
    $region6: #{tpu_custom_call.1} parent=1 // loop_footer
      %s24 = sadd.s32 1, %s20
    $region7: #{tpu_custom_call.1} parent=1 // loop_footer_branch
      %19 = sbr.rel target = $region3
    $region8: #{tpu_custom_call.1} parent=1 // loop_exit
      _
    %663 = vsyncpa [#allocation5], 1
    %s664 = scalar_lea.sflag [#allocation5], 1
    %665 = vsyncpa %s664, 1

</llo_original>
